<compile_context>
chip_gen: v7x
topology: tpu7x:2x2x1
jax: 0.10.0
libtpu: 0.0.40
codegen_flags: <defaults>
</compile_context>

<pallas_src>
import math

import jax
import jax.numpy as jnp
from jax import lax
from jax.experimental import pallas as pl
from jax.experimental.pallas import tpu as pltpu


def _logit_orf_kernel(x_ref, wvec_ref, lw_ref, bias_ref, o_ref):
    # x_ref:    (TB, S, D)   TB batch rows per grid step
    # wvec_ref: (1, D)       self.weights
    # lw_ref:   (O, D)       linear weight (torch layout, never transposed)
    # bias_ref: (O, 1)       linear bias as a column (broadcasts over lanes)
    # o_ref:    (O, TB*S)    lane-dense output slab (tokens on lanes)
    TB, S, D = x_ref.shape

    x2 = x_ref[...].reshape(TB * S, D)                       # token rows

    # --- weighted_embedding ------------------------------------------------
    # s = x . weights  (D-contraction on the MXU) -> (TB*S, 1)
    s = lax.dot_general(x2, wvec_ref[...], (((1,), (1,)), ((), ())),
                        preferred_element_type=jnp.float32)
    s3 = s.reshape(TB, S, 1)

    # softmax over the S axis, independently per batch row (exact division;
    # the denominator has only TB scalars, so approx reciprocal buys nothing).
    m = jnp.max(s3, axis=1, keepdims=True)                   # (TB, 1, 1)
    e = jnp.exp(s3 - m)                                      # (TB, S, 1)
    denom = jnp.sum(e, axis=1, keepdims=True)                # (TB, 1, 1)
    p = (e / denom).reshape(TB * S, 1)                       # (TB*S, 1)

    wx2 = x2 * p                                             # (TB*S, D)

    # --- score_weighted: sigmoid(Linear(weighted_x)), transposed ------------
    # logits^T = lin_w @ weighted_x^T -> (O, TB*S): tokens land on the lane
    # axis, so the output store is unmasked / full-width.
    logits_t = lax.dot_general(lw_ref[...], wx2, (((1,), (1,)), ((), ())),
                               preferred_element_type=jnp.float32)
    logits_t = logits_t + bias_ref[...]                      # (O, TB*S)
    o_ref[...] = jax.nn.sigmoid(logits_t).astype(o_ref.dtype)


def _tpu_vmem_and_cores():
    """Best-effort hardware query; conservative defaults if unavailable."""
    vmem_bytes = 64 << 20        # v7x per-TensorCore VMEM (smallest of the gens)
    num_cores = 1
    try:
        info = pltpu.get_tpu_info()
        vmem_bytes = int(getattr(info, "vmem_capacity_bytes", vmem_bytes)) or vmem_bytes
        for attr in ("num_cores", "core_count", "num_tensorcores", "tensor_core_count"):
            val = getattr(info, attr, None)
            if val:
                num_cores = int(val)
                break
    except Exception:
        pass
    return vmem_bytes, num_cores


def _pick_tile(B, S, D, O, vmem_bytes, num_cores, tile_bytes_target):
    """Pick TB (batch rows per grid step) and padded batch size."""
    per_row = S * D * 4                                   # f32 bytes per batch row
    budget = max(per_row, min(tile_bytes_target, vmem_bytes // 6))
    cap = max(1, budget // per_row)

    if cap >= B:
        tb = B
        # Megacore split only when it buys parallelism (>=2 TensorCores, v7x),
        # keeps the lane-dense output block 128-aligned, and tiles stay big.
        if (num_cores >= 2 and B % 2 == 0
                and ((B // 2) * S) % 128 == 0
                and (B // 2) * per_row >= (512 << 10)):
            tb = B // 2
        return tb, B

    # Multiple grid steps: the (O, TB*S) output block needs TB*S % 128 == 0.
    step = 128 // math.gcd(S, 128)
    tb = max(step, (cap // step) * step)
    if tb >= B:
        return B, B
    b_pad = -(-B // tb) * tb                              # ceil(B / tb) * tb
    return tb, b_pad


def _vmem_limit(tb, S, D, O, vmem_bytes):
    """Scoped-VMEM request derived from the double-buffered footprint."""
    x_tile = tb * S * D * 4
    o_tile = O * tb * S * 4
    params = (D + O * D + O) * 4
    footprint = 2 * (x_tile + o_tile) + 2 * params
    limit = footprint * 2 + (4 << 20)                     # 2x headroom + scratch
    limit = min(limit, vmem_bytes - (2 << 20))            # never request >= physical
    limit = max(limit, 8 << 20)
    return int(limit)


def logit_orf_forward(x, weights, lin_w, lin_b, *, tile_bytes=12 << 20):
    """x: (B, S, D); weights: (1, D); lin_w: (O, D) torch layout; lin_b: (O,)."""
    B, S, D = x.shape
    O = lin_w.shape[0]

    x = jnp.asarray(x, jnp.float32)
    weights = jnp.asarray(weights, jnp.float32).reshape(1, D)
    lin_w = jnp.asarray(lin_w, jnp.float32)               # keep (O, D): no .T
    bias = jnp.asarray(lin_b, jnp.float32).reshape(O, 1)  # column for (O, N) add

    vmem_bytes, num_cores = _tpu_vmem_and_cores()
    tb, b_pad = _pick_tile(B, S, D, O, vmem_bytes, num_cores, tile_bytes)
    if b_pad != B:
        x = jnp.pad(x, ((0, b_pad - B), (0, 0), (0, 0)))   # zero rows -> benign
    grid = (b_pad // tb,)

    flops = 2 * b_pad * S * D * (1 + O) + b_pad * S * D + 10 * b_pad * S * O
    transcendentals = b_pad * S * (1 + O)                  # exp + sigmoid
    bytes_accessed = 4 * (b_pad * S * D + O * b_pad * S + D + O * D + O)

    out_t = pl.pallas_call(
        _logit_orf_kernel,
        out_shape=jax.ShapeDtypeStruct((O, b_pad * S), jnp.float32),
        grid_spec=pltpu.PrefetchScalarGridSpec(
            num_scalar_prefetch=0,
            grid=grid,
            in_specs=[
                pl.BlockSpec((tb, S, D), lambda b: (b, 0, 0)),
                pl.BlockSpec((1, D), lambda b: (0, 0)),
                pl.BlockSpec((O, D), lambda b: (0, 0)),
                pl.BlockSpec((O, 1), lambda b: (0, 0)),
            ],
            out_specs=pl.BlockSpec((O, tb * S), lambda b: (0, b)),
        ),
        compiler_params=pltpu.CompilerParams(
            dimension_semantics=("parallel",),
            vmem_limit_bytes=_vmem_limit(tb, S, D, O, vmem_bytes),
        ),
        cost_estimate=pl.CostEstimate(
            flops=flops,
            transcendentals=transcendentals,
            bytes_accessed=bytes_accessed,
        ),
    )(x, weights, lin_w, bias)

    out_t = out_t[:, :B * S]                               # drop batch padding
    return out_t.reshape(O, B, S).transpose(1, 2, 0)       # -> (B, S, O), free in XLA


def logit_orf_reference(x, weights, lin_w, lin_b):
    wv_sum = jnp.sum(weights * x, axis=-1)                 # (B, S)
    p = jax.nn.softmax(wv_sum, axis=1)[..., None]          # (B, S, 1)
    weighted_x = x * p
    logits = jnp.einsum("bsd,od->bso", weighted_x, lin_w) + lin_b
    return jax.nn.sigmoid(logits)


if __name__ == "__main__":
    key = jax.random.PRNGKey(0)
    k_x, k_w, k_lw, k_lb = jax.random.split(key, 4)

    B, S, D, O = 2, 8, 32, 4   # batch, seq, n_inputs, n_outputs

    x = jax.random.normal(k_x, (B, S, D), dtype=jnp.float32)
    # nn.Parameter(torch.rand(1, n_inputs)) -> uniform [0, 1)
    weights = jax.random.uniform(k_w, (1, D), dtype=jnp.float32)
    # nn.Linear(n_inputs, n_outputs): weight (O, D), bias (O,)
    bound = 1.0 / (D ** 0.5)
    lin_w = jax.random.uniform(k_lw, (O, D), dtype=jnp.float32,
                               minval=-bound, maxval=bound)
    lin_b = jax.random.uniform(k_lb, (O,), dtype=jnp.float32,
                               minval=-bound, maxval=bound)

    out = jax.block_until_ready(logit_orf_forward(x, weights, lin_w, lin_b))
    ref = logit_orf_reference(x, weights, lin_w, lin_b)

    assert out.shape == (B, S, O)
    # Exact softmax division now -> tighter tolerance than the previous 1e-4.
    assert jnp.allclose(out, ref, atol=2e-5, rtol=2e-5), "mismatch vs reference"

    print("KERNEL_OK")
</pallas_src>

<mosaic_0001>
module attributes {stable_mosaic.version = 11 : i64} {
  func.func @_logit_orf_kernel(%arg0: i32, %arg1: memref<2x8x32xf32, #tpu.memory_space<vmem>>, %arg2: memref<1x32xf32, #tpu.memory_space<vmem>>, %arg3: memref<4x32xf32, #tpu.memory_space<vmem>>, %arg4: memref<4x1xf32, #tpu.memory_space<vmem>>, %arg5: memref<4x16xf32, #tpu.memory_space<vmem>>) attributes {dimension_semantics = [#tpu.dimension_semantics<parallel>], iteration_bounds = array<i64: 1>, scalar_prefetch = 0 : i64, scratch_operands = 0 : i64, tpu.core_type = #tpu.core_type<tc>, window_params = [{transform_indices = @transform_0, window_bounds = array<i64: 2, 8, 32>}, {pipeline_mode = #tpu.pipeline_mode<synchronous>, transform_indices = @transform_1, window_bounds = array<i64: 1, 32>}, {pipeline_mode = #tpu.pipeline_mode<synchronous>, transform_indices = @transform_2, window_bounds = array<i64: 4, 32>}, {pipeline_mode = #tpu.pipeline_mode<synchronous>, transform_indices = @transform_3, window_bounds = array<i64: 4, 1>}, {transform_indices = @transform_4, window_bounds = array<i64: 4, 16>}]} {
    %c0 = arith.constant 0 : index
    %c0_0 = arith.constant 0 : index
    %c0_1 = arith.constant 0 : index
    %0 = vector.load %arg1[%c0, %c0_0, %c0_1] : memref<2x8x32xf32, #tpu.memory_space<vmem>>, vector<2x8x32xf32>
    %1 = vector.shape_cast %0 : vector<2x8x32xf32> to vector<16x32xf32>
    %c0_2 = arith.constant 0 : index
    %c0_3 = arith.constant 0 : index
    %2 = vector.load %arg2[%c0_2, %c0_3] : memref<1x32xf32, #tpu.memory_space<vmem>>, vector<1x32xf32>
    %cst = arith.constant dense<0.000000e+00> : vector<16x1xf32>
    %3 = tpu.matmul %1, %2, %cst {dimension_numbers = #tpu.dot_dimension_numbers<[1], [1], [0], [0], [0, 0, 1, 0], [], []>} : vector<16x32xf32>, vector<1x32xf32>, vector<16x1xf32> -> vector<16x1xf32>
    %4 = vector.shape_cast %3 : vector<16x1xf32> to vector<2x8x1xf32>
    %cst_4 = arith.constant dense<0xFF800000> : vector<2x1xf32>
    %5 = vector.multi_reduction <maximumf>, %4, %cst_4 [1] : vector<2x8x1xf32> to vector<2x1xf32>
    %6 = vector.shape_cast %5 : vector<2x1xf32> to vector<2x1x1xf32>
    %7 = vector.broadcast %6 : vector<2x1x1xf32> to vector<2x8x1xf32>
    %8 = arith.subf %4, %7 : vector<2x8x1xf32>
    %9 = math.exp %8 : vector<2x8x1xf32>
    %cst_5 = arith.constant dense<0.000000e+00> : vector<2x1xf32>
    %10 = vector.multi_reduction <add>, %9, %cst_5 [1] : vector<2x8x1xf32> to vector<2x1xf32>
    %11 = vector.shape_cast %10 : vector<2x1xf32> to vector<2x1x1xf32>
    %12 = vector.broadcast %11 : vector<2x1x1xf32> to vector<2x8x1xf32>
    %13 = arith.divf %9, %12 : vector<2x8x1xf32>
    %14 = vector.shape_cast %13 : vector<2x8x1xf32> to vector<16x1xf32>
    %15 = vector.broadcast %14 : vector<16x1xf32> to vector<16x32xf32>
    %16 = arith.mulf %1, %15 : vector<16x32xf32>
    %c0_6 = arith.constant 0 : index
    %c0_7 = arith.constant 0 : index
    %17 = vector.load %arg3[%c0_6, %c0_7] : memref<4x32xf32, #tpu.memory_space<vmem>>, vector<4x32xf32>
    %cst_8 = arith.constant dense<0.000000e+00> : vector<4x16xf32>
    %18 = tpu.matmul %17, %16, %cst_8 {dimension_numbers = #tpu.dot_dimension_numbers<[1], [1], [0], [0], [0, 0, 1, 0], [], []>} : vector<4x32xf32>, vector<16x32xf32>, vector<4x16xf32> -> vector<4x16xf32>
    %c0_9 = arith.constant 0 : index
    %c0_10 = arith.constant 0 : index
    %19 = vector.load %arg4[%c0_9, %c0_10] : memref<4x1xf32, #tpu.memory_space<vmem>>, vector<4x1xf32>
    %20 = vector.broadcast %19 : vector<4x1xf32> to vector<4x16xf32>
    %21 = arith.addf %18, %20 : vector<4x16xf32>
    %22 = arith.negf %21 : vector<4x16xf32>
    %23 = math.exp %22 : vector<4x16xf32>
    %cst_11 = arith.constant 1.000000e+00 : f32
    %24 = vector.broadcast %cst_11 : f32 to vector<4x16xf32>
    %25 = arith.addf %24, %23 : vector<4x16xf32>
    %26 = arith.divf %24, %25 : vector<4x16xf32>
    %c0_12 = arith.constant 0 : index
    %c0_13 = arith.constant 0 : index
    %27 = vector.load %arg5[%c0_12, %c0_13] : memref<4x16xf32, #tpu.memory_space<vmem>>, vector<4x16xf32>
    tpu.vector_store %arg5[%c0_12, %c0_13], %26 {strides = array<i32>} : memref<4x16xf32, #tpu.memory_space<vmem>>, vector<4x16xf32>,
    return
  }
  func.func @transform_0(%arg0: i32) -> (i32, i32, i32) {
    %c0_i32 = arith.constant 0 : i32
    %c0_i32_0 = arith.constant 0 : i32
    %c0_i32_1 = arith.constant 0 : i32
    return %arg0, %c0_i32, %c0_i32_0 : i32, i32, i32
  }
  func.func @transform_1(%arg0: i32) -> (i32, i32) {
    %c0_i32 = arith.constant 0 : i32
    %c0_i32_0 = arith.constant 0 : i32
    %c0_i32_1 = arith.constant 0 : i32
    return %c0_i32, %c0_i32_0 : i32, i32
  }
  func.func @transform_2(%arg0: i32) -> (i32, i32) {
    %c0_i32 = arith.constant 0 : i32
    %c0_i32_0 = arith.constant 0 : i32
    %c0_i32_1 = arith.constant 0 : i32
    return %c0_i32, %c0_i32_0 : i32, i32
  }
  func.func @transform_3(%arg0: i32) -> (i32, i32) {
    %c0_i32 = arith.constant 0 : i32
    %c0_i32_0 = arith.constant 0 : i32
    %c0_i32_1 = arith.constant 0 : i32
    return %c0_i32, %c0_i32_0 : i32, i32
  }
  func.func @transform_4(%arg0: i32) -> (i32, i32) {
    %c0_i32 = arith.constant 0 : i32
    %c0_i32_0 = arith.constant 0 : i32
    return %c0_i32, %arg0 : i32, i32
  }
}

</mosaic_0001>

<llo_original>
// kernel: tpu_custom_call.1
$region0: #{tpu_custom_call.1}
  #allocation0 [shape = 'u32[]', space=smem, size = 0x4, offset = 0x4, fixed_abs, tag = 'smem constant byte address 0x4 - core index']
  #allocation1 [shape = 'u32[144,128]{1,0:T(1,128)}', space=vmem, size = 0x12000, scoped, tag = 'internal scratch']
  %s0 = inlined_call_operand.hbm [shape: f32[2,8,32], index: 0, kind: input, shape index: {}]
  %s1 = inlined_call_operand.vmem [shape: f32[1,32], index: 1, kind: input, shape index: {}]
  %s2 = inlined_call_operand.vmem [shape: f32[4,32], index: 2, kind: input, shape index: {}]
  %s3 = inlined_call_operand.vmem [shape: f32[4,1], index: 3, kind: input, shape index: {}]
  %s4 = inlined_call_operand.hbm [shape: f32[4,16], index: 4, kind: output, shape index: {}]
  %s5 = sld [smem:[#allocation0]]
  $region30: #{tpu_custom_call.1} parent=0
    _
  %s7 = ssub.s32 1, %s5
  %s8 = scalar_select 0, %s7, %s5
  $region1: #{tpu_custom_call.1} parent=0
    #allocation2 [shape = 'u8[8192]{0}', space=vmem, size = 0x2000, scoped, tag = 'input window, operand 0, single buffered']
    #allocation3 [shape = 's32[1]{0}', space=sflag, size = 0x4, scoped, tag = 'scoped memory for tpu_custom_call.1']
    #allocation4 [shape = 's32[1]{0}', space=sflag, size = 0x4, scoped, tag = 'scoped memory for tpu_custom_call.1']
    #allocation5 [shape = 'u8[2048]{0}', space=vmem, size = 0x800, scoped, tag = 'output window, operand 0, single buffered']
    %9 = vsyncpa [#allocation3], 0
    %10 = vsyncpa [#allocation4], 0
    // Predicated region
    $region2: #{tpu_custom_call.1} parent=1 // pred_check
      _
    $region3: #{tpu_custom_call.1} parent=1 // pred_check_branch
      %12 = sbr.rel (0) target = $region5
    $region4: #{tpu_custom_call.1} parent=1 // pred_region
      %s14 = ssub.s32 256, 256
      %15 = vsyncadd [#allocation3], %s14
      %s16 = sshll.u32 [#allocation2], 4
      %s17 = int_to_ptr.vmem [resolvable:$true] %s16
      %22 = dma.hbm_to_vmem [thread:$0]  %s0, 256, %s17, [#allocation3], 128, 128, 8
    $region5: #{tpu_custom_call.1} parent=1 // pred_fallthru
      _
    // Predicated region
    $region6: #{tpu_custom_call.1} parent=1 // pred_check
      _
    $region7: #{tpu_custom_call.1} parent=1 // pred_check_branch
      %24 = sbr.rel (0) target = $region9
    $region8: #{tpu_custom_call.1} parent=1 // pred_region
      _
    $region9: #{tpu_custom_call.1} parent=1 // pred_fallthru
      _
    // Predicated region
    $region10: #{tpu_custom_call.1} parent=1 // pred_check
      _
    $region11: #{tpu_custom_call.1} parent=1 // pred_check_branch
      %26 = sbr.rel (0) target = $region13
    $region12: #{tpu_custom_call.1} parent=1 // pred_region
      _
    $region13: #{tpu_custom_call.1} parent=1 // pred_fallthru
      _
    // Predicated region
    $region14: #{tpu_custom_call.1} parent=1 // pred_check
      _
    $region15: #{tpu_custom_call.1} parent=1 // pred_check_branch
      %28 = sbr.rel (0) target = $region17
    $region16: #{tpu_custom_call.1} parent=1 // pred_region
      _
    $region17: #{tpu_custom_call.1} parent=1 // pred_fallthru
      _
    // Predicated region
    $region18: #{tpu_custom_call.1} parent=1 // pred_check
      _
    $region19: #{tpu_custom_call.1} parent=1 // pred_check_branch
      %30 = sbr.rel (0) target = $region21
    $region20: #{tpu_custom_call.1} parent=1 // pred_region
      %31 = dma.done [#allocation3], 256
    $region21: #{tpu_custom_call.1} parent=1 // pred_fallthru
      _
    %v32 = vld [vmem:[#allocation2] sm:$0xff]
    %v33 = vld [vmem:[#allocation2 + $0x8] sm:$0xff]
    %v34 = vld [vmem:[%s1] sm:$0x1]
    %v36 = vlaneseq
    %v37 = vshrl.u32 %v36, 7
    %v38 = vsub.s32 0, %v37
    %v39 = vrot.slane %v34, %v38
    %v41 = vmul.f32 %v32, %v39
    %v42 = vmul.f32 %v33, %v39
    %vm43 = vcmask 261120
    %v44 = vsel %vm43, %v41, 0.0
    %45 = vadd.xlane.f32.xlu0 %v44
    %v46 = vpop.xlane.xlu0 %45
    %v47 = vsel %vm43, %v42, 0.0
    %48 = vadd.xlane.f32.xlu0 %v47
    %v49 = vpop.xlane.xlu0 %48
    %v50 = vrot.slane %v46, 4
    %v51 = vmax.f32 %v46, %v50
    %v52 = vrot.slane %v51, 2
    %v53 = vmax.f32 %v51, %v52
    %v54 = vrot.slane %v53, 1
    %v55 = vmax.f32 %v53, %v54
    %v56 = vrot.slane %v49, 4
    %v57 = vmax.f32 %v49, %v56
    %v58 = vrot.slane %v57, 2
    %v59 = vmax.f32 %v57, %v58
    %v60 = vrot.slane %v59, 1
    %v61 = vmax.f32 %v59, %v60
    %v62 = vsub.f32 %v46, %v55
    %v63 = vsub.f32 %v49, %v61
    %v64 = vmul.f32 %v62, 1.442695
    %v65 = vpow.pop %v64
    %v66 = vmul.f32 %v63, 1.442695
    %v67 = vpow.pop %v66
    %v68 = vrot.slane %v65, 4
    %v69 = vadd.f32 %v65, %v68
    %v70 = vrot.slane %v69, 2
    %v71 = vadd.f32 %v69, %v70
    %v72 = vrot.slane %v71, 1
    %v73 = vadd.f32 %v71, %v72
    %v74 = vrot.slane %v67, 4
    %v75 = vadd.f32 %v67, %v74
    %v76 = vrot.slane %v75, 2
    %v77 = vadd.f32 %v75, %v76
    %v78 = vrot.slane %v77, 1
    %v79 = vadd.f32 %v77, %v78
    %v80 = vrcp.pop %v73
    %v81 = vmul.f32 %v65, %v80
    %v82 = vrcp.pop %v79
    %v83 = vmul.f32 %v67, %v82
    %v84 = vmul.f32 %v32, %v81
    %v85 = vmul.f32 %v33, %v83
    %v86 = vld [vmem:[%s2] sm:$0xf]
    %v87 = vld [vmem:[%s3] sm:$0xf]
    %89 = vset.pattern.permute.xlu0 0
    %90 = vperm.xlu0 %89, %v87
    %v91 = vpop.permute.xlu0 %90
    %v94 = vsel %vm43, %v86, 0
    %v97 = vsel %vm43, %v84, 0
    %v100 = vsel %vm43, %v85, 0
    %102 = vmatprep.subr.mxu0 0.0
    %103 = vmatpush1.xpose.msra.mxu0 %v97
    %104 = vmatprep.subr.mxu0 0.0
    %105 = vmatpush1.xpose.msra.mxu0 %v100
    %106 = vmatprep.subr.mxu0 0.0
    %107 = vmatpush1.xpose.msra.mxu0 0.0
    %108 = vmatprep.subr.mxu0 0.0
    %109 = vmatpush1.xpose.msra.mxu0 0.0
    %110 = vmatprep.subr.mxu0 0.0
    %111 = vmatpush1.xpose.msra.mxu0 0.0
    %112 = vmatprep.subr.mxu0 0.0
    %113 = vmatpush1.xpose.msra.mxu0 0.0
    %114 = vmatprep.subr.mxu0 0.0
    %115 = vmatpush1.xpose.msra.mxu0 0.0
    %116 = vmatprep.subr.mxu0 0.0
    %117 = vmatpush1.xpose.msra.mxu0 0.0
    %118 = vmatprep.subr.mxu0 0.0
    %119 = vmatpush1.xpose.msra.mxu0 0.0
    %120 = vmatprep.subr.mxu0 0.0
    %121 = vmatpush1.xpose.msra.mxu0 0.0
    %122 = vmatprep.subr.mxu0 0.0
    %123 = vmatpush1.xpose.msra.mxu0 0.0
    %124 = vmatprep.subr.mxu0 0.0
    %125 = vmatpush1.xpose.msra.mxu0 0.0
    %126 = vmatprep.subr.mxu0 0.0
    %127 = vmatpush1.xpose.msra.mxu0 0.0
    %128 = vmatprep.subr.mxu0 0.0
    %129 = vmatpush1.xpose.msra.mxu0 0.0
    %130 = vmatprep.subr.mxu0 0.0
    %131 = vmatpush1.xpose.msra.mxu0 0.0
    %132 = vmatprep.subr.mxu0 0.0
    %133 = vmatpush1.xpose.msra.mxu0 0.0
    %134 = vmatprep.subr.mxu0 0.0
    %135 = vmatpush1.xpose.msra.mxu0 0.0
    %136 = vmatprep.subr.mxu0 0.0
    %137 = vmatpush1.xpose.msra.mxu0 0.0
    %138 = vmatprep.subr.mxu0 0.0
    %139 = vmatpush1.xpose.msra.mxu0 0.0
    %140 = vmatprep.subr.mxu0 0.0
    %141 = vmatpush1.xpose.msra.mxu0 0.0
    %142 = vmatprep.subr.mxu0 0.0
    %143 = vmatpush1.xpose.msra.mxu0 0.0
    %144 = vmatprep.subr.mxu0 0.0
    %145 = vmatpush1.xpose.msra.mxu0 0.0
    %146 = vmatprep.subr.mxu0 0.0
    %147 = vmatpush1.xpose.msra.mxu0 0.0
    %148 = vmatprep.subr.mxu0 0.0
    %149 = vmatpush1.xpose.msra.mxu0 0.0
    %150 = vmatprep.subr.mxu0 0.0
    %151 = vmatpush1.xpose.msra.mxu0 0.0
    %152 = vmatprep.subr.mxu0 0.0
    %153 = vmatpush1.xpose.msra.mxu0 0.0
    %154 = vmatprep.subr.mxu0 0.0
    %155 = vmatpush1.xpose.msra.mxu0 0.0
    %156 = vmatprep.subr.mxu0 0.0
    %157 = vmatpush1.xpose.msra.mxu0 0.0
    %158 = vmatprep.subr.mxu0 0.0
    %159 = vmatpush1.xpose.msra.mxu0 0.0
    %160 = vmatprep.subr.mxu0 0.0
    %161 = vmatpush1.xpose.msra.mxu0 0.0
    %162 = vmatprep.subr.mxu0 0.0
    %163 = vmatpush1.xpose.msra.mxu0 0.0
    %164 = vmatprep.subr.mxu0 0.0
    %165 = vmatpush1.xpose.msra.mxu0 0.0
    %166 = vmatprep.mubr.f32.mxu0 0.0
    %167 = vmatmul.mubr.f32.gmra.mrb[0].mxu0 %v94
    %v168 = vpop.f32.mrb[0].mxu0
    %v169 = vadd.f32 %v91, %v168
    %v170 = vpop.f32.mrb[0].mxu0
    %171 = vdwg.mxu0
    %v172 = vxor.u32 %v169, 2147483648
    %v173 = vmul.f32 %v172, 1.442695
    %v174 = vpow.pop %v173
    %v175 = vadd.f32 %v174, 1.0
    %v176 = vrcp.pop %v175
    %v177 = vmul.f32 1.0, %v176
    %vm178 = vcmask 125952
    %179 = vst.msk [vmem:[#allocation5] sm:$0xf] %vm178, %v177
    // Predicated region
    $region22: #{tpu_custom_call.1} parent=1 // pred_check
      _
    $region23: #{tpu_custom_call.1} parent=1 // pred_check_branch
      %181 = sbr.rel (0) target = $region25
    $region24: #{tpu_custom_call.1} parent=1 // pred_region
      %s183 = ssub.s32 64, 64
      %184 = vsyncadd [#allocation4], %s183
      %s186 = sshll.u32 [#allocation5], 4
      %s187 = int_to_ptr.vmem [resolvable:$true] %s186
      %189 = dma.vmem_to_hbm [thread:$0]  %s187, 64, %s4, [#allocation4]
    $region25: #{tpu_custom_call.1} parent=1 // pred_fallthru
      _
    // Predicated region
    $region26: #{tpu_custom_call.1} parent=1 // pred_check
      _
    $region27: #{tpu_custom_call.1} parent=1 // pred_check_branch
      %191 = sbr.rel (0) target = $region29
    $region28: #{tpu_custom_call.1} parent=1 // pred_region
      %192 = dma.done [#allocation4], 64
    $region29: #{tpu_custom_call.1} parent=1 // pred_fallthru
      _
    %193 = vsyncpa [#allocation3], 1
    %194 = vsyncpa [#allocation4], 1

</llo_original>
